<compile_context>
chip_gen: v7x
topology: tpu7x:2x2x1
jax: 0.10.0
libtpu: 0.0.40
codegen_flags: <defaults>
</compile_context>

<pallas_src>
import functools
import math

import jax
import jax.numpy as jnp
from jax import lax
from jax.experimental import pallas as pl
from jax.experimental.pallas import tpu as pltpu


def _round_up(x, m):
    return ((x + m - 1) // m) * m


def _embedding_gather_kernel(ids_ref, emb_hbm, pe_ref, out_ref, rows, sems, *,
                             tokens_per_step, seq_len, nbuf):
    """One grid step gathers `tokens_per_step` embedding rows and adds pe.

    ids_ref:  [N_pad] int32 in SMEM (scalar prefetch) -- flattened token ids
    emb_hbm:  [V, D] embedding table, resident in HBM (pl.ANY)
    pe_ref:   [L, D] sinusoidal positional encodings (VMEM block, constant index)
    out_ref:  [tokens_per_step, D] output tile (lane-dense: D on lanes)
    rows:     [nbuf, 1, D] VMEM scratch -- in-flight gathered rows
    sems:     [nbuf] DMA semaphores
    """
    step = pl.program_id(0)
    base = step * tokens_per_step
    vocab = emb_hbm.shape[0]

    def fetch(t, slot):
        # Clamp so an out-of-range token id cannot trigger an OOB HBM DMA.
        # (PyTorch nn.Embedding would raise; we clamp instead of faulting.)
        tok = ids_ref[base + t]
        tok = jnp.clip(tok, 0, vocab - 1)
        pltpu.make_async_copy(
            emb_hbm.at[pl.ds(tok, 1), :], rows.at[slot], sems.at[slot]
        ).start()

    # Prime up to `nbuf` outstanding row DMAs to hide HBM latency.
    for t in range(min(nbuf, tokens_per_step)):
        fetch(t, t)

    def body(t, carry):
        slot = lax.rem(t, nbuf)
        # Wait for this token's row (dummy src; wait only consumes the sem).
        pltpu.make_async_copy(
            emb_hbm.at[pl.ds(0, 1), :], rows.at[slot], sems.at[slot]
        ).wait()
        pos = lax.rem(base + t, seq_len)           # position = token index % L
        out_ref[pl.ds(t, 1), :] = (
            rows[slot] + pe_ref[pl.ds(pos, 1), :]
        ).astype(out_ref.dtype)
        # Refill the freed slot with the row for token t + nbuf.
        @pl.when(t + nbuf < tokens_per_step)
        def _():
            fetch(t + nbuf, slot)
        return carry

    lax.fori_loop(0, tokens_per_step, body, 0)


def make_sinusoidal_pe(max_len, d_model):
    """Standard transformer positional encoding buffer, shape [max_len, d_model]."""
    position = jnp.arange(max_len, dtype=jnp.float32)[:, None]
    div_term = jnp.exp(jnp.arange(0, d_model, 2, dtype=jnp.float32)
                       * (-math.log(10000.0) / d_model))
    pe = jnp.zeros((max_len, d_model), dtype=jnp.float32)
    pe = pe.at[:, 0::2].set(jnp.sin(position * div_term))
    pe = pe.at[:, 1::2].set(jnp.cos(position * div_term))
    return pe


def embedding_forward(ids, emb_table, pe, dropout_rate=0.0, *,
                      token_tile=512, prefetch_depth=8):
    """ids: [B, L] int, emb_table: [V, D], pe: [max_len, D] -> [B, L, D]."""
    # TODO(synk): training-mode dropout (pltpu.prng_*) not implemented; eval mode = identity.
    del dropout_rate
    B, L = ids.shape
    V, D = emb_table.shape
    assert L <= pe.shape[0], "sequence length exceeds max_len of positional encodings"

    # Flatten (B, L) -> one token axis; tile it (sublane-aligned, up to `token_tile`).
    N = B * L
    T = min(token_tile, _round_up(N, 8))
    N_pad = _round_up(N, T)
    nbuf = max(1, min(prefetch_depth, T))

    ids_flat = ids.reshape(N).astype(jnp.int32)
    if N_pad != N:
        ids_flat = jnp.pad(ids_flat, (0, N_pad - N))   # padded tokens -> row 0, trimmed below

    pe_slice = pe[:L].astype(emb_table.dtype)          # pe[:x.size(0)] from PositionEmbedding

    kernel = functools.partial(
        _embedding_gather_kernel,
        tokens_per_step=T, seq_len=L, nbuf=nbuf)

    itemsize = jnp.dtype(emb_table.dtype).itemsize
    cost = pl.CostEstimate(
        flops=N_pad * D,                                   # the pe add
        transcendentals=0,
        bytes_accessed=(2 * N_pad * D + L * D) * itemsize + N_pad * 4,
    )

    out_flat = pl.pallas_call(
        kernel,
        out_shape=jax.ShapeDtypeStruct((N_pad, D), emb_table.dtype),
        grid_spec=pltpu.PrefetchScalarGridSpec(
            num_scalar_prefetch=1,                         # ids -> SMEM
            grid=(N_pad // T,),
            in_specs=[
                # Embedding table never enters VMEM wholesale: rows are DMA-gathered.
                pl.BlockSpec(memory_space=pl.ANY),
                # pe block index is constant across the grid, so the pipeline DMAs it
                # once.  (Could be single-buffered via pipeline_mode=pl.Buffered(1) to
                # halve its VMEM footprint; left default since pe[:L] is tiny here.)
                pl.BlockSpec((L, D), lambda i, ids: (0, 0)),
            ],
            out_specs=pl.BlockSpec((T, D), lambda i, ids: (i, 0)),
            scratch_shapes=[
                pltpu.VMEM((nbuf, 1, D), emb_table.dtype),  # in-flight gathered rows
                pltpu.SemaphoreType.DMA((nbuf,)),
            ],
        ),
        compiler_params=pltpu.CompilerParams(
            dimension_semantics=("parallel",)),             # token tiles -> megacore
        cost_estimate=cost,
    )(ids_flat, emb_table, pe_slice)

    return out_flat[:N].reshape(B, L, D)


if __name__ == "__main__":
    # Small, module-consistent shapes.
    vocab_size = 32
    d_model = 128
    max_len = 16
    dropout_rate = 0.1   # inference -> identity
    batch, seq_len = 2, 8

    key = jax.random.PRNGKey(0)
    k_ids, k_emb = jax.random.split(key)

    # Deterministic parameter init (nn.Embedding weight ~ N(0,1)).
    emb_table = jax.random.normal(k_emb, (vocab_size, d_model), dtype=jnp.float32)
    pe = make_sinusoidal_pe(max_len, d_model)

    ids = jax.random.randint(k_ids, (batch, seq_len), 0, vocab_size, dtype=jnp.int32)

    out = embedding_forward(ids, emb_table, pe, dropout_rate)
    out = jax.block_until_ready(out)

    # Pure-JAX reference check.
    ref = emb_table[ids] + pe[:seq_len][None, :, :]
    assert out.shape == (batch, seq_len, d_model)
    assert jnp.allclose(out, ref, atol=1e-5, rtol=1e-5)

    print("KERNEL_OK")
</pallas_src>

<mosaic_0001>
module attributes {stable_mosaic.version = 11 : i64} {
  func.func @_embedding_gather_kernel(%arg0: i32, %arg1: memref<16xi32, #tpu.memory_space<smem>>, %arg2: memref<32x128xf32, #tpu.memory_space<any>>, %arg3: memref<8x128xf32, #tpu.memory_space<vmem>>, %arg4: memref<16x128xf32, #tpu.memory_space<vmem>>, %arg5: memref<8x1x128xf32, #tpu.memory_space<vmem>>, %arg6: memref<8x!tpu.dma_semaphore, #tpu.memory_space<semaphore_mem>>) attributes {dimension_semantics = [#tpu.dimension_semantics<parallel>], iteration_bounds = array<i64: 1>, scalar_prefetch = 1 : i64, scratch_operands = 2 : i64, tpu.core_type = #tpu.core_type<tc>, window_params = [{}, {pipeline_mode = #tpu.pipeline_mode<synchronous>, transform_indices = @transform_1, window_bounds = array<i64: 8, 128>}, {transform_indices = @transform_2, window_bounds = array<i64: 16, 128>}]} {
    %c16_i32 = arith.constant 16 : i32
    %0 = arith.muli %arg0, %c16_i32 : i32
    %c0_i32 = arith.constant 0 : i32
    %1 = arith.addi %0, %c0_i32 : i32
    %2 = arith.index_cast %1 : i32 to index
    %3 = memref.load %arg1[%2] : memref<16xi32, #tpu.memory_space<smem>>
    %c0_i32_0 = arith.constant 0 : i32
    %c31_i32 = arith.constant 31 : i32
    %4 = arith.maxsi %c0_i32_0, %3 : i32
    %5 = arith.minsi %c31_i32, %4 : i32
    %c0_i32_1 = arith.constant 0 : i32
    %c0_i32_2 = arith.constant 0 : i32
    %c0_i32_3 = arith.constant 0 : i32
    %6 = tpu.memref_slice %arg2[%5, %c0_i32_3] : memref<32x128xf32, #tpu.memory_space<any>> -> memref<1x128xf32, #tpu.memory_space<any>>
    %c0_i32_4 = arith.constant 0 : i32
    %c0_i32_5 = arith.constant 0 : i32
    %7 = tpu.memref_slice %arg5[%c0_i32_1, %c0_i32_4, %c0_i32_5] : memref<8x1x128xf32, #tpu.memory_space<vmem>> -> memref<1x1x128xf32, #tpu.memory_space<vmem>>
    %8 = tpu.memref_squeeze %7 : memref<1x1x128xf32, #tpu.memory_space<vmem>> -> memref<1x128xf32, #tpu.memory_space<vmem>>
    %9 = tpu.memref_slice %arg6[%c0_i32_2] : memref<8x!tpu.dma_semaphore, #tpu.memory_space<semaphore_mem>> -> memref<1x!tpu.dma_semaphore, #tpu.memory_space<semaphore_mem>>
    %10 = tpu.memref_squeeze %9 : memref<1x!tpu.dma_semaphore, #tpu.memory_space<semaphore_mem>> -> memref<!tpu.dma_semaphore, #tpu.memory_space<semaphore_mem>>
    tpu.enqueue_dma source(%6 : memref<1x128xf32, #tpu.memory_space<any>>) target(%8 : memref<1x128xf32, #tpu.memory_space<vmem>>) target_semaphore(%10 : memref<!tpu.dma_semaphore, #tpu.memory_space<semaphore_mem>>)
    %c1_i32 = arith.constant 1 : i32
    %11 = arith.addi %0, %c1_i32 : i32
    %12 = arith.index_cast %11 : i32 to index
    %13 = memref.load %arg1[%12] : memref<16xi32, #tpu.memory_space<smem>>
    %c0_i32_6 = arith.constant 0 : i32
    %c31_i32_7 = arith.constant 31 : i32
    %14 = arith.maxsi %c0_i32_6, %13 : i32
    %15 = arith.minsi %c31_i32_7, %14 : i32
    %c1_i32_8 = arith.constant 1 : i32
    %c1_i32_9 = arith.constant 1 : i32
    %c0_i32_10 = arith.constant 0 : i32
    %16 = tpu.memref_slice %arg2[%15, %c0_i32_10] : memref<32x128xf32, #tpu.memory_space<any>> -> memref<1x128xf32, #tpu.memory_space<any>>
    %c0_i32_11 = arith.constant 0 : i32
    %c0_i32_12 = arith.constant 0 : i32
    %17 = tpu.memref_slice %arg5[%c1_i32_8, %c0_i32_11, %c0_i32_12] : memref<8x1x128xf32, #tpu.memory_space<vmem>> -> memref<1x1x128xf32, #tpu.memory_space<vmem>>
    %18 = tpu.memref_squeeze %17 : memref<1x1x128xf32, #tpu.memory_space<vmem>> -> memref<1x128xf32, #tpu.memory_space<vmem>>
    %19 = tpu.memref_slice %arg6[%c1_i32_9] : memref<8x!tpu.dma_semaphore, #tpu.memory_space<semaphore_mem>> -> memref<1x!tpu.dma_semaphore, #tpu.memory_space<semaphore_mem>>
    %20 = tpu.memref_squeeze %19 : memref<1x!tpu.dma_semaphore, #tpu.memory_space<semaphore_mem>> -> memref<!tpu.dma_semaphore, #tpu.memory_space<semaphore_mem>>
    tpu.enqueue_dma source(%16 : memref<1x128xf32, #tpu.memory_space<any>>) target(%18 : memref<1x128xf32, #tpu.memory_space<vmem>>) target_semaphore(%20 : memref<!tpu.dma_semaphore, #tpu.memory_space<semaphore_mem>>)
    %c2_i32 = arith.constant 2 : i32
    %21 = arith.addi %0, %c2_i32 : i32
    %22 = arith.index_cast %21 : i32 to index
    %23 = memref.load %arg1[%22] : memref<16xi32, #tpu.memory_space<smem>>
    %c0_i32_13 = arith.constant 0 : i32
    %c31_i32_14 = arith.constant 31 : i32
    %24 = arith.maxsi %c0_i32_13, %23 : i32
    %25 = arith.minsi %c31_i32_14, %24 : i32
    %c2_i32_15 = arith.constant 2 : i32
    %c2_i32_16 = arith.constant 2 : i32
    %c0_i32_17 = arith.constant 0 : i32
    %26 = tpu.memref_slice %arg2[%25, %c0_i32_17] : memref<32x128xf32, #tpu.memory_space<any>> -> memref<1x128xf32, #tpu.memory_space<any>>
    %c0_i32_18 = arith.constant 0 : i32
    %c0_i32_19 = arith.constant 0 : i32
    %27 = tpu.memref_slice %arg5[%c2_i32_15, %c0_i32_18, %c0_i32_19] : memref<8x1x128xf32, #tpu.memory_space<vmem>> -> memref<1x1x128xf32, #tpu.memory_space<vmem>>
    %28 = tpu.memref_squeeze %27 : memref<1x1x128xf32, #tpu.memory_space<vmem>> -> memref<1x128xf32, #tpu.memory_space<vmem>>
    %29 = tpu.memref_slice %arg6[%c2_i32_16] : memref<8x!tpu.dma_semaphore, #tpu.memory_space<semaphore_mem>> -> memref<1x!tpu.dma_semaphore, #tpu.memory_space<semaphore_mem>>
    %30 = tpu.memref_squeeze %29 : memref<1x!tpu.dma_semaphore, #tpu.memory_space<semaphore_mem>> -> memref<!tpu.dma_semaphore, #tpu.memory_space<semaphore_mem>>
    tpu.enqueue_dma source(%26 : memref<1x128xf32, #tpu.memory_space<any>>) target(%28 : memref<1x128xf32, #tpu.memory_space<vmem>>) target_semaphore(%30 : memref<!tpu.dma_semaphore, #tpu.memory_space<semaphore_mem>>)
    %c3_i32 = arith.constant 3 : i32
    %31 = arith.addi %0, %c3_i32 : i32
    %32 = arith.index_cast %31 : i32 to index
    %33 = memref.load %arg1[%32] : memref<16xi32, #tpu.memory_space<smem>>
    %c0_i32_20 = arith.constant 0 : i32
    %c31_i32_21 = arith.constant 31 : i32
    %34 = arith.maxsi %c0_i32_20, %33 : i32
    %35 = arith.minsi %c31_i32_21, %34 : i32
    %c3_i32_22 = arith.constant 3 : i32
    %c3_i32_23 = arith.constant 3 : i32
    %c0_i32_24 = arith.constant 0 : i32
    %36 = tpu.memref_slice %arg2[%35, %c0_i32_24] : memref<32x128xf32, #tpu.memory_space<any>> -> memref<1x128xf32, #tpu.memory_space<any>>
    %c0_i32_25 = arith.constant 0 : i32
    %c0_i32_26 = arith.constant 0 : i32
    %37 = tpu.memref_slice %arg5[%c3_i32_22, %c0_i32_25, %c0_i32_26] : memref<8x1x128xf32, #tpu.memory_space<vmem>> -> memref<1x1x128xf32, #tpu.memory_space<vmem>>
    %38 = tpu.memref_squeeze %37 : memref<1x1x128xf32, #tpu.memory_space<vmem>> -> memref<1x128xf32, #tpu.memory_space<vmem>>
    %39 = tpu.memref_slice %arg6[%c3_i32_23] : memref<8x!tpu.dma_semaphore, #tpu.memory_space<semaphore_mem>> -> memref<1x!tpu.dma_semaphore, #tpu.memory_space<semaphore_mem>>
    %40 = tpu.memref_squeeze %39 : memref<1x!tpu.dma_semaphore, #tpu.memory_space<semaphore_mem>> -> memref<!tpu.dma_semaphore, #tpu.memory_space<semaphore_mem>>
    tpu.enqueue_dma source(%36 : memref<1x128xf32, #tpu.memory_space<any>>) target(%38 : memref<1x128xf32, #tpu.memory_space<vmem>>) target_semaphore(%40 : memref<!tpu.dma_semaphore, #tpu.memory_space<semaphore_mem>>)
    %c4_i32 = arith.constant 4 : i32
    %41 = arith.addi %0, %c4_i32 : i32
    %42 = arith.index_cast %41 : i32 to index
    %43 = memref.load %arg1[%42] : memref<16xi32, #tpu.memory_space<smem>>
    %c0_i32_27 = arith.constant 0 : i32
    %c31_i32_28 = arith.constant 31 : i32
    %44 = arith.maxsi %c0_i32_27, %43 : i32
    %45 = arith.minsi %c31_i32_28, %44 : i32
    %c4_i32_29 = arith.constant 4 : i32
    %c4_i32_30 = arith.constant 4 : i32
    %c0_i32_31 = arith.constant 0 : i32
    %46 = tpu.memref_slice %arg2[%45, %c0_i32_31] : memref<32x128xf32, #tpu.memory_space<any>> -> memref<1x128xf32, #tpu.memory_space<any>>
    %c0_i32_32 = arith.constant 0 : i32
    %c0_i32_33 = arith.constant 0 : i32
    %47 = tpu.memref_slice %arg5[%c4_i32_29, %c0_i32_32, %c0_i32_33] : memref<8x1x128xf32, #tpu.memory_space<vmem>> -> memref<1x1x128xf32, #tpu.memory_space<vmem>>
    %48 = tpu.memref_squeeze %47 : memref<1x1x128xf32, #tpu.memory_space<vmem>> -> memref<1x128xf32, #tpu.memory_space<vmem>>
    %49 = tpu.memref_slice %arg6[%c4_i32_30] : memref<8x!tpu.dma_semaphore, #tpu.memory_space<semaphore_mem>> -> memref<1x!tpu.dma_semaphore, #tpu.memory_space<semaphore_mem>>
    %50 = tpu.memref_squeeze %49 : memref<1x!tpu.dma_semaphore, #tpu.memory_space<semaphore_mem>> -> memref<!tpu.dma_semaphore, #tpu.memory_space<semaphore_mem>>
    tpu.enqueue_dma source(%46 : memref<1x128xf32, #tpu.memory_space<any>>) target(%48 : memref<1x128xf32, #tpu.memory_space<vmem>>) target_semaphore(%50 : memref<!tpu.dma_semaphore, #tpu.memory_space<semaphore_mem>>)
    %c5_i32 = arith.constant 5 : i32
    %51 = arith.addi %0, %c5_i32 : i32
    %52 = arith.index_cast %51 : i32 to index
    %53 = memref.load %arg1[%52] : memref<16xi32, #tpu.memory_space<smem>>
    %c0_i32_34 = arith.constant 0 : i32
    %c31_i32_35 = arith.constant 31 : i32
    %54 = arith.maxsi %c0_i32_34, %53 : i32
    %55 = arith.minsi %c31_i32_35, %54 : i32
    %c5_i32_36 = arith.constant 5 : i32
    %c5_i32_37 = arith.constant 5 : i32
    %c0_i32_38 = arith.constant 0 : i32
    %56 = tpu.memref_slice %arg2[%55, %c0_i32_38] : memref<32x128xf32, #tpu.memory_space<any>> -> memref<1x128xf32, #tpu.memory_space<any>>
    %c0_i32_39 = arith.constant 0 : i32
    %c0_i32_40 = arith.constant 0 : i32
    %57 = tpu.memref_slice %arg5[%c5_i32_36, %c0_i32_39, %c0_i32_40] : memref<8x1x128xf32, #tpu.memory_space<vmem>> -> memref<1x1x128xf32, #tpu.memory_space<vmem>>
    %58 = tpu.memref_squeeze %57 : memref<1x1x128xf32, #tpu.memory_space<vmem>> -> memref<1x128xf32, #tpu.memory_space<vmem>>
    %59 = tpu.memref_slice %arg6[%c5_i32_37] : memref<8x!tpu.dma_semaphore, #tpu.memory_space<semaphore_mem>> -> memref<1x!tpu.dma_semaphore, #tpu.memory_space<semaphore_mem>>
    %60 = tpu.memref_squeeze %59 : memref<1x!tpu.dma_semaphore, #tpu.memory_space<semaphore_mem>> -> memref<!tpu.dma_semaphore, #tpu.memory_space<semaphore_mem>>
    tpu.enqueue_dma source(%56 : memref<1x128xf32, #tpu.memory_space<any>>) target(%58 : memref<1x128xf32, #tpu.memory_space<vmem>>) target_semaphore(%60 : memref<!tpu.dma_semaphore, #tpu.memory_space<semaphore_mem>>)
    %c6_i32 = arith.constant 6 : i32
    %61 = arith.addi %0, %c6_i32 : i32
    %62 = arith.index_cast %61 : i32 to index
    %63 = memref.load %arg1[%62] : memref<16xi32, #tpu.memory_space<smem>>
    %c0_i32_41 = arith.constant 0 : i32
    %c31_i32_42 = arith.constant 31 : i32
    %64 = arith.maxsi %c0_i32_41, %63 : i32
    %65 = arith.minsi %c31_i32_42, %64 : i32
    %c6_i32_43 = arith.constant 6 : i32
    %c6_i32_44 = arith.constant 6 : i32
    %c0_i32_45 = arith.constant 0 : i32
    %66 = tpu.memref_slice %arg2[%65, %c0_i32_45] : memref<32x128xf32, #tpu.memory_space<any>> -> memref<1x128xf32, #tpu.memory_space<any>>
    %c0_i32_46 = arith.constant 0 : i32
    %c0_i32_47 = arith.constant 0 : i32
    %67 = tpu.memref_slice %arg5[%c6_i32_43, %c0_i32_46, %c0_i32_47] : memref<8x1x128xf32, #tpu.memory_space<vmem>> -> memref<1x1x128xf32, #tpu.memory_space<vmem>>
    %68 = tpu.memref_squeeze %67 : memref<1x1x128xf32, #tpu.memory_space<vmem>> -> memref<1x128xf32, #tpu.memory_space<vmem>>
    %69 = tpu.memref_slice %arg6[%c6_i32_44] : memref<8x!tpu.dma_semaphore, #tpu.memory_space<semaphore_mem>> -> memref<1x!tpu.dma_semaphore, #tpu.memory_space<semaphore_mem>>
    %70 = tpu.memref_squeeze %69 : memref<1x!tpu.dma_semaphore, #tpu.memory_space<semaphore_mem>> -> memref<!tpu.dma_semaphore, #tpu.memory_space<semaphore_mem>>
    tpu.enqueue_dma source(%66 : memref<1x128xf32, #tpu.memory_space<any>>) target(%68 : memref<1x128xf32, #tpu.memory_space<vmem>>) target_semaphore(%70 : memref<!tpu.dma_semaphore, #tpu.memory_space<semaphore_mem>>)
    %c7_i32 = arith.constant 7 : i32
    %71 = arith.addi %0, %c7_i32 : i32
    %72 = arith.index_cast %71 : i32 to index
    %73 = memref.load %arg1[%72] : memref<16xi32, #tpu.memory_space<smem>>
    %c0_i32_48 = arith.constant 0 : i32
    %c31_i32_49 = arith.constant 31 : i32
    %74 = arith.maxsi %c0_i32_48, %73 : i32
    %75 = arith.minsi %c31_i32_49, %74 : i32
    %c7_i32_50 = arith.constant 7 : i32
    %c7_i32_51 = arith.constant 7 : i32
    %c0_i32_52 = arith.constant 0 : i32
    %76 = tpu.memref_slice %arg2[%75, %c0_i32_52] : memref<32x128xf32, #tpu.memory_space<any>> -> memref<1x128xf32, #tpu.memory_space<any>>
    %c0_i32_53 = arith.constant 0 : i32
    %c0_i32_54 = arith.constant 0 : i32
    %77 = tpu.memref_slice %arg5[%c7_i32_50, %c0_i32_53, %c0_i32_54] : memref<8x1x128xf32, #tpu.memory_space<vmem>> -> memref<1x1x128xf32, #tpu.memory_space<vmem>>
    %78 = tpu.memref_squeeze %77 : memref<1x1x128xf32, #tpu.memory_space<vmem>> -> memref<1x128xf32, #tpu.memory_space<vmem>>
    %79 = tpu.memref_slice %arg6[%c7_i32_51] : memref<8x!tpu.dma_semaphore, #tpu.memory_space<semaphore_mem>> -> memref<1x!tpu.dma_semaphore, #tpu.memory_space<semaphore_mem>>
    %80 = tpu.memref_squeeze %79 : memref<1x!tpu.dma_semaphore, #tpu.memory_space<semaphore_mem>> -> memref<!tpu.dma_semaphore, #tpu.memory_space<semaphore_mem>>
    tpu.enqueue_dma source(%76 : memref<1x128xf32, #tpu.memory_space<any>>) target(%78 : memref<1x128xf32, #tpu.memory_space<vmem>>) target_semaphore(%80 : memref<!tpu.dma_semaphore, #tpu.memory_space<semaphore_mem>>)
    %c0_i32_55 = arith.constant 0 : i32
    %c16_i32_56 = arith.constant 16 : i32
    %81 = arith.addi %c0_i32_55, %c16_i32_56 : i32
    %c1_i32_57 = arith.constant 1 : i32
    scf.for %arg7 = %c0_i32_55 to %81 step %c1_i32_57  : i32 {
      %c8_i32 = arith.constant 8 : i32
      %82 = arith.remsi %arg7, %c8_i32 : i32
      %c0_i32_59 = arith.constant 0 : i32
      %c0_i32_60 = arith.constant 0 : i32
      %83 = tpu.memref_slice %arg2[%c0_i32_59, %c0_i32_60] : memref<32x128xf32, #tpu.memory_space<any>> -> memref<1x128xf32, #tpu.memory_space<any>>
      %c0_i32_61 = arith.constant 0 : i32
      %c0_i32_62 = arith.constant 0 : i32
      %84 = tpu.memref_slice %arg5[%82, %c0_i32_61, %c0_i32_62] : memref<8x1x128xf32, #tpu.memory_space<vmem>> -> memref<1x1x128xf32, #tpu.memory_space<vmem>>
      %85 = tpu.memref_squeeze %84 : memref<1x1x128xf32, #tpu.memory_space<vmem>> -> memref<1x128xf32, #tpu.memory_space<vmem>>
      %86 = tpu.memref_slice %arg6[%82] : memref<8x!tpu.dma_semaphore, #tpu.memory_space<semaphore_mem>> -> memref<1x!tpu.dma_semaphore, #tpu.memory_space<semaphore_mem>>
      %87 = tpu.memref_squeeze %86 : memref<1x!tpu.dma_semaphore, #tpu.memory_space<semaphore_mem>> -> memref<!tpu.dma_semaphore, #tpu.memory_space<semaphore_mem>>
      tpu.wait_dma2 semaphore(%87 : memref<!tpu.dma_semaphore, #tpu.memory_space<semaphore_mem>>) src(%83 : memref<1x128xf32, #tpu.memory_space<any>>) dst(%85 : memref<1x128xf32, #tpu.memory_space<vmem>>)
      %88 = arith.addi %0, %arg7 : i32
      %c8_i32_63 = arith.constant 8 : i32
      %89 = arith.remsi %88, %c8_i32_63 : i32
      %90 = arith.index_cast %82 : i32 to index
      %c0 = arith.constant 0 : index
      %c0_64 = arith.constant 0 : index
      %91 = vector.load %arg5[%90, %c0, %c0_64] : memref<8x1x128xf32, #tpu.memory_space<vmem>>, vector<1x1x128xf32>
      %92 = vector.shape_cast %91 : vector<1x1x128xf32> to vector<1x128xf32>
      %93 = arith.index_cast %89 : i32 to index
      %c0_65 = arith.constant 0 : index
      %94 = vector.load %arg3[%93, %c0_65] : memref<8x128xf32, #tpu.memory_space<vmem>>, vector<1x128xf32>
      %95 = arith.addf %92, %94 : vector<1x128xf32>
      %96 = arith.index_cast %arg7 : i32 to index
      %c0_66 = arith.constant 0 : index
      %97 = vector.load %arg4[%96, %c0_66] : memref<16x128xf32, #tpu.memory_space<vmem>>, vector<1x128xf32>
      tpu.vector_store %arg4[%96, %c0_66], %95 {strides = array<i32>} : memref<16x128xf32, #tpu.memory_space<vmem>>, vector<1x128xf32>,
      %c8_i32_67 = arith.constant 8 : i32
      %98 = arith.addi %arg7, %c8_i32_67 : i32
      %c16_i32_68 = arith.constant 16 : i32
      %99 = arith.cmpi slt, %98, %c16_i32_68 : i32
      %100 = arith.extui %99 : i1 to i32
      %c0_i32_69 = arith.constant 0 : i32
      %101 = arith.cmpi ne, %100, %c0_i32_69 : i32
      scf.if %101 {
        %c8_i32_70 = arith.constant 8 : i32
        %102 = arith.addi %arg7, %c8_i32_70 : i32
        %103 = arith.addi %0, %102 : i32
        %104 = arith.index_cast %103 : i32 to index
        %105 = memref.load %arg1[%104] : memref<16xi32, #tpu.memory_space<smem>>
        %c0_i32_71 = arith.constant 0 : i32
        %c31_i32_72 = arith.constant 31 : i32
        %106 = arith.maxsi %c0_i32_71, %105 : i32
        %107 = arith.minsi %c31_i32_72, %106 : i32
        %c0_i32_73 = arith.constant 0 : i32
        %108 = tpu.memref_slice %arg2[%107, %c0_i32_73] : memref<32x128xf32, #tpu.memory_space<any>> -> memref<1x128xf32, #tpu.memory_space<any>>
        %c0_i32_74 = arith.constant 0 : i32
        %c0_i32_75 = arith.constant 0 : i32
        %109 = tpu.memref_slice %arg5[%82, %c0_i32_74, %c0_i32_75] : memref<8x1x128xf32, #tpu.memory_space<vmem>> -> memref<1x1x128xf32, #tpu.memory_space<vmem>>
        %110 = tpu.memref_squeeze %109 : memref<1x1x128xf32, #tpu.memory_space<vmem>> -> memref<1x128xf32, #tpu.memory_space<vmem>>
        %111 = tpu.memref_slice %arg6[%82] : memref<8x!tpu.dma_semaphore, #tpu.memory_space<semaphore_mem>> -> memref<1x!tpu.dma_semaphore, #tpu.memory_space<semaphore_mem>>
        %112 = tpu.memref_squeeze %111 : memref<1x!tpu.dma_semaphore, #tpu.memory_space<semaphore_mem>> -> memref<!tpu.dma_semaphore, #tpu.memory_space<semaphore_mem>>
        tpu.enqueue_dma source(%108 : memref<1x128xf32, #tpu.memory_space<any>>) target(%110 : memref<1x128xf32, #tpu.memory_space<vmem>>) target_semaphore(%112 : memref<!tpu.dma_semaphore, #tpu.memory_space<semaphore_mem>>)
      } else {
      }
    }
    %c16_i32_58 = arith.constant 16 : i32
    return
  }
  func.func @transform_1(%arg0: i32, %arg1: memref<16xi32, #tpu.memory_space<smem>>) -> (i32, i32) {
    %c0_i32 = arith.constant 0 : i32
    %c0_i32_0 = arith.constant 0 : i32
    %c0_i32_1 = arith.constant 0 : i32
    return %c0_i32, %c0_i32_0 : i32, i32
  }
  func.func @transform_2(%arg0: i32, %arg1: memref<16xi32, #tpu.memory_space<smem>>) -> (i32, i32) {
    %c0_i32 = arith.constant 0 : i32
    %c0_i32_0 = arith.constant 0 : i32
    return %arg0, %c0_i32 : i32, i32
  }
}

</mosaic_0001>

<llo_original>
// kernel: tpu_custom_call.1
$region0: #{tpu_custom_call.1}
  #allocation0 [shape = 'u32[]', space=smem, size = 0x4, offset = 0x4, fixed_abs, tag = 'smem constant byte address 0x4 - core index']
  #allocation1 [shape = 'u32[144,128]{1,0:T(1,128)}', space=vmem, size = 0x12000, scoped, tag = 'internal scratch']
  #allocation2 [shape = 'f32[8,1,128]{2,1,0:T(1,128)}', space=vmem, size = 0x1000, scoped, tag = 'scratch operand']
  #allocation3 [shape = 's32[8]{0}', space=sflag, size = 0x20, scoped, tag = 'scratch operand']
  #allocation4 [shape = 's32[1]{0}', space=sflag, size = 0x4, scoped, tag = 'scoped memory for tpu_custom_call.1']
  #allocation5 [shape = 'u8[512]{0}', space=smem, size = 0x200, scoped, tag = 'prefetched SMEM operand 0']
  #allocation10 [shape = 's32[]', space=sflag, size = 0x4, offset = 0, fixed_abs, tag = 'sflag constant byte address 0x0 - dummy sync flag']
  #allocation11 [shape = 's32[]', space=sflag, size = 0x4, offset = 0, fixed_abs, tag = 'sflag constant byte address 0x0 - dummy sync flag']
  #allocation12 [shape = 'u32[]', space=smem, size = 0x4, offset = 0x44, fixed_abs, tag = 'smem constant byte address 0x44 - assertion arg 0']
  #allocation13 [shape = 'u32[]', space=smem, size = 0x4, offset = 0x48, fixed_abs, tag = 'smem constant byte address 0x48 - assertion arg 1']
  #allocation14 [shape = 's32[]', space=sflag, size = 0x4, offset = 0, fixed_abs, tag = 'sflag constant byte address 0x0 - dummy sync flag']
  #allocation15 [shape = 's32[]', space=sflag, size = 0x4, offset = 0, fixed_abs, tag = 'sflag constant byte address 0x0 - dummy sync flag']
  #allocation16 [shape = 's32[]', space=sflag, size = 0x4, offset = 0, fixed_abs, tag = 'sflag constant byte address 0x0 - dummy sync flag']
  #allocation17 [shape = 's32[]', space=sflag, size = 0x4, offset = 0, fixed_abs, tag = 'sflag constant byte address 0x0 - dummy sync flag']
  #allocation18 [shape = 's32[]', space=sflag, size = 0x4, offset = 0, fixed_abs, tag = 'sflag constant byte address 0x0 - dummy sync flag']
  #allocation19 [shape = 's32[]', space=sflag, size = 0x4, offset = 0, fixed_abs, tag = 'sflag constant byte address 0x0 - dummy sync flag']
  #allocation20 [shape = 's32[]', space=sflag, size = 0x4, offset = 0, fixed_abs, tag = 'sflag constant byte address 0x0 - dummy sync flag']
  #allocation21 [shape = 's32[]', space=sflag, size = 0x4, offset = 0, fixed_abs, tag = 'sflag constant byte address 0x0 - dummy sync flag']
  #allocation22 [shape = 's32[]', space=sflag, size = 0x4, offset = 0, fixed_abs, tag = 'sflag constant byte address 0x0 - dummy sync flag']
  #allocation23 [shape = 's32[]', space=sflag, size = 0x4, offset = 0, fixed_abs, tag = 'sflag constant byte address 0x0 - dummy sync flag']
  #allocation24 [shape = 's32[]', space=sflag, size = 0x4, offset = 0, fixed_abs, tag = 'sflag constant byte address 0x0 - dummy sync flag']
  #allocation25 [shape = 's32[]', space=sflag, size = 0x4, offset = 0, fixed_abs, tag = 'sflag constant byte address 0x0 - dummy sync flag']
  #allocation26 [shape = 's32[]', space=sflag, size = 0x4, offset = 0, fixed_abs, tag = 'sflag constant byte address 0x0 - dummy sync flag']
  #allocation27 [shape = 's32[]', space=sflag, size = 0x4, offset = 0, fixed_abs, tag = 'sflag constant byte address 0x0 - dummy sync flag']
  #allocation28 [shape = 's32[]', space=sflag, size = 0x4, offset = 0, fixed_abs, tag = 'sflag constant byte address 0x0 - dummy sync flag']
  #allocation29 [shape = 's32[]', space=sflag, size = 0x4, offset = 0, fixed_abs, tag = 'sflag constant byte address 0x0 - dummy sync flag']
  %s0 = inlined_call_operand.hbm [shape: s32[16], index: 0, kind: input, shape index: {}]
  %s1 = inlined_call_operand.hbm [shape: f32[32,128], index: 1, kind: input, shape index: {}]
  %s2 = inlined_call_operand.hbm [shape: f32[8,128], index: 2, kind: input, shape index: {}]
  %s3 = inlined_call_operand.hbm [shape: f32[16,128], index: 3, kind: output, shape index: {}]
  %s4 = sld [smem:[#allocation0]]
  $region65: #{tpu_custom_call.1} parent=0
    _
  %s6 = ssub.s32 1, %s4
  %s7 = scalar_select 0, %s6, %s4
  %9 = dma.hbm_to_smem %s0, 16, [#allocation5], [#allocation4]
  %10 = dma.done [#allocation4], 16
  %11 = sfence
  $region1: #{tpu_custom_call.1} parent=0
    #allocation6 [shape = 'u8[4096]{0}', space=vmem, size = 0x1000, scoped, tag = 'input window, operand 2, single buffered']
    #allocation7 [shape = 's32[1]{0}', space=sflag, size = 0x4, scoped, tag = 'scoped memory for tpu_custom_call.1']
    #allocation8 [shape = 's32[1]{0}', space=sflag, size = 0x4, scoped, tag = 'scoped memory for tpu_custom_call.1']
    #allocation9 [shape = 'u8[8192]{0}', space=vmem, size = 0x2000, scoped, tag = 'output window, operand 0, single buffered']
    %12 = vsyncpa [#allocation7], 0
    %13 = vsyncpa [#allocation8], 0
    // Predicated region
    $region2: #{tpu_custom_call.1} parent=1 // pred_check
      _
    $region3: #{tpu_custom_call.1} parent=1 // pred_check_branch
      %15 = sbr.rel (0) target = $region5
    $region4: #{tpu_custom_call.1} parent=1 // pred_region
      %s17 = ssub.s32 128, 128
      %18 = vsyncadd [#allocation7], %s17
      %s20 = sshll.u32 [#allocation6], 4
      %s21 = int_to_ptr.vmem [resolvable:$true] %s20
      %23 = dma.hbm_to_vmem [thread:$0]  %s2, 128, %s21, [#allocation7]
    $region5: #{tpu_custom_call.1} parent=1 // pred_fallthru
      _
    // Predicated region
    $region6: #{tpu_custom_call.1} parent=1 // pred_check
      _
    $region7: #{tpu_custom_call.1} parent=1 // pred_check_branch
      %25 = sbr.rel (0) target = $region9
    $region8: #{tpu_custom_call.1} parent=1 // pred_region
      %26 = dma.done [#allocation7], 128
    $region9: #{tpu_custom_call.1} parent=1 // pred_fallthru
      _
    %s27 = smul.u32 0, 16
    %s28 = sld [smem:[#allocation5 + %s27]]
    %p29 = scmp.gt.s32.totalorder %s28, 0
    %s30 = scalar_select %p29, %s28, 0
    %p31 = scmp.lt.s32.totalorder %s30, 31
    %s32 = scalar_select %p31, %s30, 31
    %s33 = smul.addr %s32, 16
    %s34 = scalar_lea.hbm %s1, %s33
    // Predicated region
    $region10: #{tpu_custom_call.1} parent=1 // pred_check
      _
    $region11: #{tpu_custom_call.1} parent=1 // pred_check_branch
      %36 = sbr.rel target = $region13
    $region12: #{tpu_custom_call.1} parent=1 // pred_region
      %37 = sst [smem:[#allocation12]] [#allocation11]
      %38 = sst [smem:[#allocation13]] [#allocation10]
    $region13: #{tpu_custom_call.1} parent=1 // pred_fallthru
      _
    %40 = shalt.err (0)
    %s42 = sshll.u32 [#allocation2], 4
    %s43 = int_to_ptr.vmem [resolvable:$true] %s42
    %45 = dma.hbm_to_vmem [thread:$0]  %s34, 16, %s43, [#allocation3]
    %s46 = sadd.s32 %s27, 1
    %s47 = sld [smem:[#allocation5 + %s46]]
    %p48 = scmp.gt.s32.totalorder %s47, 0
    %s49 = scalar_select %p48, %s47, 0
    %p50 = scmp.lt.s32.totalorder %s49, 31
    %s51 = scalar_select %p50, %s49, 31
    %s52 = smul.addr %s51, 16
    %s53 = scalar_lea.hbm %s1, %s52
    %s54 = scalar_lea.vmem [#allocation2], 1
    %s55 = scalar_lea.sflag [#allocation3], 1
    // Predicated region
    $region14: #{tpu_custom_call.1} parent=1 // pred_check
      _
    $region15: #{tpu_custom_call.1} parent=1 // pred_check_branch
      %57 = sbr.rel target = $region17
    $region16: #{tpu_custom_call.1} parent=1 // pred_region
      %58 = sst [smem:[#allocation12]] [#allocation15]
      %59 = sst [smem:[#allocation13]] [#allocation14]
    $region17: #{tpu_custom_call.1} parent=1 // pred_fallthru
      _
    %61 = shalt.err (0)
    %s63 = sshll.u32 %s54, 4
    %s64 = int_to_ptr.vmem [resolvable:$true] %s63
    %66 = dma.hbm_to_vmem [thread:$0]  %s53, 16, %s64, %s55
    %s67 = sadd.s32 %s27, 2
    %s68 = sld [smem:[#allocation5 + %s67]]
    %p69 = scmp.gt.s32.totalorder %s68, 0
    %s70 = scalar_select %p69, %s68, 0
    %p71 = scmp.lt.s32.totalorder %s70, 31
    %s72 = scalar_select %p71, %s70, 31
    %s73 = smul.addr %s72, 16
    %s74 = scalar_lea.hbm %s1, %s73
    %s75 = scalar_lea.vmem [#allocation2], 2
    %s76 = scalar_lea.sflag [#allocation3], 2
    // Predicated region
    $region18: #{tpu_custom_call.1} parent=1 // pred_check
      _
    $region19: #{tpu_custom_call.1} parent=1 // pred_check_branch
      %78 = sbr.rel target = $region21
    $region20: #{tpu_custom_call.1} parent=1 // pred_region
      %79 = sst [smem:[#allocation12]] [#allocation17]
      %80 = sst [smem:[#allocation13]] [#allocation16]
    $region21: #{tpu_custom_call.1} parent=1 // pred_fallthru
      _
    %82 = shalt.err (0)
    %s84 = sshll.u32 %s75, 4
    %s85 = int_to_ptr.vmem [resolvable:$true] %s84
    %87 = dma.hbm_to_vmem [thread:$0]  %s74, 16, %s85, %s76
    %s88 = sadd.s32 %s27, 3
    %s89 = sld [smem:[#allocation5 + %s88]]
    %p90 = scmp.gt.s32.totalorder %s89, 0
    %s91 = scalar_select %p90, %s89, 0
    %p92 = scmp.lt.s32.totalorder %s91, 31
    %s93 = scalar_select %p92, %s91, 31
    %s94 = smul.addr %s93, 16
    %s95 = scalar_lea.hbm %s1, %s94
    %s96 = scalar_lea.vmem [#allocation2], 3
    %s97 = scalar_lea.sflag [#allocation3], 3
    // Predicated region
    $region22: #{tpu_custom_call.1} parent=1 // pred_check
      _
    $region23: #{tpu_custom_call.1} parent=1 // pred_check_branch
      %99 = sbr.rel target = $region25
    $region24: #{tpu_custom_call.1} parent=1 // pred_region
      %100 = sst [smem:[#allocation12]] [#allocation19]
      %101 = sst [smem:[#allocation13]] [#allocation18]
    $region25: #{tpu_custom_call.1} parent=1 // pred_fallthru
      _
    %103 = shalt.err (0)
    %s105 = sshll.u32 %s96, 4
    %s106 = int_to_ptr.vmem [resolvable:$true] %s105
    %108 = dma.hbm_to_vmem [thread:$0]  %s95, 16, %s106, %s97
    %s109 = sadd.s32 %s27, 4
    %s110 = sld [smem:[#allocation5 + %s109]]
    %p111 = scmp.gt.s32.totalorder %s110, 0
    %s112 = scalar_select %p111, %s110, 0
    %p113 = scmp.lt.s32.totalorder %s112, 31
    %s114 = scalar_select %p113, %s112, 31
    %s115 = smul.addr %s114, 16
    %s116 = scalar_lea.hbm %s1, %s115
    %s117 = scalar_lea.vmem [#allocation2], 4
    %s118 = scalar_lea.sflag [#allocation3], 4
    // Predicated region
    $region26: #{tpu_custom_call.1} parent=1 // pred_check
      _
    $region27: #{tpu_custom_call.1} parent=1 // pred_check_branch
      %120 = sbr.rel target = $region29
    $region28: #{tpu_custom_call.1} parent=1 // pred_region
      %121 = sst [smem:[#allocation12]] [#allocation21]
      %122 = sst [smem:[#allocation13]] [#allocation20]
    $region29: #{tpu_custom_call.1} parent=1 // pred_fallthru
      _
    %124 = shalt.err (0)
    %s126 = sshll.u32 %s117, 4
    %s127 = int_to_ptr.vmem [resolvable:$true] %s126
    %129 = dma.hbm_to_vmem [thread:$0]  %s116, 16, %s127, %s118
    %s130 = sadd.s32 %s27, 5
    %s131 = sld [smem:[#allocation5 + %s130]]
    %p132 = scmp.gt.s32.totalorder %s131, 0
    %s133 = scalar_select %p132, %s131, 0
    %p134 = scmp.lt.s32.totalorder %s133, 31
    %s135 = scalar_select %p134, %s133, 31
    %s136 = smul.addr %s135, 16
    %s137 = scalar_lea.hbm %s1, %s136
    %s138 = scalar_lea.vmem [#allocation2], 5
    %s139 = scalar_lea.sflag [#allocation3], 5
    // Predicated region
    $region30: #{tpu_custom_call.1} parent=1 // pred_check
      _
    $region31: #{tpu_custom_call.1} parent=1 // pred_check_branch
      %141 = sbr.rel target = $region33
    $region32: #{tpu_custom_call.1} parent=1 // pred_region
      %142 = sst [smem:[#allocation12]] [#allocation23]
      %143 = sst [smem:[#allocation13]] [#allocation22]
    $region33: #{tpu_custom_call.1} parent=1 // pred_fallthru
      _
    %145 = shalt.err (0)
    %s147 = sshll.u32 %s138, 4
    %s148 = int_to_ptr.vmem [resolvable:$true] %s147
    %150 = dma.hbm_to_vmem [thread:$0]  %s137, 16, %s148, %s139
    %s151 = sadd.s32 %s27, 6
    %s152 = sld [smem:[#allocation5 + %s151]]
    %p153 = scmp.gt.s32.totalorder %s152, 0
    %s154 = scalar_select %p153, %s152, 0
    %p155 = scmp.lt.s32.totalorder %s154, 31
    %s156 = scalar_select %p155, %s154, 31
    %s157 = smul.addr %s156, 16
    %s158 = scalar_lea.hbm %s1, %s157
    %s159 = scalar_lea.vmem [#allocation2], 6
    %s160 = scalar_lea.sflag [#allocation3], 6
    // Predicated region
    $region34: #{tpu_custom_call.1} parent=1 // pred_check
      _
    $region35: #{tpu_custom_call.1} parent=1 // pred_check_branch
      %162 = sbr.rel target = $region37
    $region36: #{tpu_custom_call.1} parent=1 // pred_region
      %163 = sst [smem:[#allocation12]] [#allocation25]
      %164 = sst [smem:[#allocation13]] [#allocation24]
    $region37: #{tpu_custom_call.1} parent=1 // pred_fallthru
      _
    %166 = shalt.err (0)
    %s168 = sshll.u32 %s159, 4
    %s169 = int_to_ptr.vmem [resolvable:$true] %s168
    %171 = dma.hbm_to_vmem [thread:$0]  %s158, 16, %s169, %s160
    %s172 = sadd.s32 %s27, 7
    %s173 = sld [smem:[#allocation5 + %s172]]
    %p174 = scmp.gt.s32.totalorder %s173, 0
    %s175 = scalar_select %p174, %s173, 0
    %p176 = scmp.lt.s32.totalorder %s175, 31
    %s177 = scalar_select %p176, %s175, 31
    %s178 = smul.addr %s177, 16
    %s179 = scalar_lea.hbm %s1, %s178
    %s180 = scalar_lea.vmem [#allocation2], 7
    %s181 = scalar_lea.sflag [#allocation3], 7
    // Predicated region
    $region38: #{tpu_custom_call.1} parent=1 // pred_check
      _
    $region39: #{tpu_custom_call.1} parent=1 // pred_check_branch
      %183 = sbr.rel target = $region41
    $region40: #{tpu_custom_call.1} parent=1 // pred_region
      %184 = sst [smem:[#allocation12]] [#allocation27]
      %185 = sst [smem:[#allocation13]] [#allocation26]
    $region41: #{tpu_custom_call.1} parent=1 // pred_fallthru
      _
    %187 = shalt.err (0)
    %s189 = sshll.u32 %s180, 4
    %s190 = int_to_ptr.vmem [resolvable:$true] %s189
    %192 = dma.hbm_to_vmem [thread:$0]  %s179, 16, %s190, %s181
    loop: start=0, step=1, limit=16
    $region42: #{tpu_custom_call.1} parent=1 // loop_pre_header
      _
    $region43: #{tpu_custom_call.1} parent=1 // loop_header
      %s194 = sphi 0, %s198
      %p195 = scmp.ge.s32.totalorder %s194, 16
    $region44: #{tpu_custom_call.1} parent=1 // loop_header_branch
      %197 = sbr.rel (%p195) target = $region48
    $region45: #{tpu_custom_call.1} parent=1 // loop_body
      %p199 = scmp.lt.s32.totalorder %s194, 0
      %s200 = ssub.s32 0, %s194
      %s201 = scalar_select %p199, %s200, %s194
      %s202 = sand.u32 %s201, 7
      %s203 = ssub.s32 0, %s202
      %s204 = scalar_select %p199, %s203, %s202
      %s205 = scalar_lea.vmem [#allocation2], %s204
      %s206 = scalar_lea.sflag [#allocation3], %s204
      %s207 = smul.u32 1, 1
      %s208 = sshll.u32 %s207, 4
      %209 = dma.done %s206, %s208
      %s210 = sadd.s32 %s27, %s194
      %p211 = scmp.lt.s32.totalorder %s210, 0
      %s212 = ssub.s32 0, %s210
      %s213 = scalar_select %p211, %s212, %s210
      %s214 = sand.u32 %s213, 7
      %s215 = ssub.s32 0, %s214
      %s216 = scalar_select %p211, %s215, %s214
      %v217 = vld [vmem:[%s205] sm:$0x1]
      %s218 = scalar_lea.vmem [#allocation6], %s216
      %v219 = vld [vmem:[%s218] sm:$0x1]
      %v220 = vadd.f32 %v217, %v219
      %s221 = scalar_lea.vmem [#allocation9], %s194
      %222 = vst [vmem:[%s221] sm:$0x1] %v220
      %s223 = sadd.s32 %s194, 8
      %p224 = scmp.lt.s32.totalorder %s223, 16
      // Predicated region
      $region49: #{tpu_custom_call.1} parent=45 // pred_check
        %p225 = pneg %p224
      $region50: #{tpu_custom_call.1} parent=45 // pred_check_branch
        %227 = sbr.rel (%p225) target = $region52
      $region51: #{tpu_custom_call.1} parent=45 // pred_region
        %s228 = sadd.s32 %s27, %s223
        %s229 = sld [smem:[#allocation5 + %s228]]
        %p230 = scmp.gt.s32.totalorder %s229, 0
        %s231 = scalar_select %p230, %s229, 0
        %p232 = scmp.lt.s32.totalorder %s231, 31
        %s233 = scalar_select %p232, %s231, 31
        %s234 = smul.addr %s233, 16
        %s235 = scalar_lea.hbm %s1, %s234
        // Predicated region
        $region53: #{tpu_custom_call.1} parent=51 // pred_check
          _
        $region54: #{tpu_custom_call.1} parent=51 // pred_check_branch
          %237 = sbr.rel target = $region56
        $region55: #{tpu_custom_call.1} parent=51 // pred_region
          %238 = sst [smem:[#allocation12]] [#allocation29]
          %239 = sst [smem:[#allocation13]] [#allocation28]
        $region56: #{tpu_custom_call.1} parent=51 // pred_fallthru
          _
        %241 = shalt.err (0)
        %s243 = sshll.u32 %s205, 4
        %s244 = int_to_ptr.vmem [resolvable:$true] %s243
        %246 = dma.hbm_to_vmem [thread:$0]  %s235, 16, %s244, %s206
      $region52: #{tpu_custom_call.1} parent=45 // pred_fallthru
        _
    $region46: #{tpu_custom_call.1} parent=1 // loop_footer
      %s198 = sadd.s32 1, %s194
    $region47: #{tpu_custom_call.1} parent=1 // loop_footer_branch
      %193 = sbr.rel target = $region43
    $region48: #{tpu_custom_call.1} parent=1 // loop_exit
      _
    // Predicated region
    $region57: #{tpu_custom_call.1} parent=1 // pred_check
      _
    $region58: #{tpu_custom_call.1} parent=1 // pred_check_branch
      %248 = sbr.rel (0) target = $region60
    $region59: #{tpu_custom_call.1} parent=1 // pred_region
      %s250 = ssub.s32 256, 256
      %251 = vsyncadd [#allocation8], %s250
      %s252 = sshll.u32 [#allocation9], 4
      %s253 = int_to_ptr.vmem [resolvable:$true] %s252
      %258 = dma.vmem_to_hbm [thread:$0]  %s253, 256, %s3, [#allocation8], 128, 128, 8
    $region60: #{tpu_custom_call.1} parent=1 // pred_fallthru
      _
    // Predicated region
    $region61: #{tpu_custom_call.1} parent=1 // pred_check
      _
    $region62: #{tpu_custom_call.1} parent=1 // pred_check_branch
      %260 = sbr.rel (0) target = $region64
    $region63: #{tpu_custom_call.1} parent=1 // pred_region
      %261 = dma.done [#allocation8], 256
    $region64: #{tpu_custom_call.1} parent=1 // pred_fallthru
      _
    %262 = vsyncpa [#allocation7], 1
    %263 = vsyncpa [#allocation8], 1
  %264 = vsyncmov [#allocation3]
  %s265 = vpop.sfrf %264
  %p266 = scmp.eq.s32.totalorder %s265, 0
  %p267 = pneg %p266
  %269 = shalt.err (%p267)
  %s270 = scalar_lea.sflag [#allocation3], 1
  %271 = vsyncmov %s270
  %s272 = vpop.sfrf %271
  %p273 = scmp.eq.s32.totalorder %s272, 0
  %p274 = pneg %p273
  %276 = shalt.err (%p274)
  %s277 = scalar_lea.sflag [#allocation3], 2
  %278 = vsyncmov %s277
  %s279 = vpop.sfrf %278
  %p280 = scmp.eq.s32.totalorder %s279, 0
  %p281 = pneg %p280
  %283 = shalt.err (%p281)
  %s284 = scalar_lea.sflag [#allocation3], 3
  %285 = vsyncmov %s284
  %s286 = vpop.sfrf %285
  %p287 = scmp.eq.s32.totalorder %s286, 0
  %p288 = pneg %p287
  %290 = shalt.err (%p288)
  %s291 = scalar_lea.sflag [#allocation3], 4
  %292 = vsyncmov %s291
  %s293 = vpop.sfrf %292
  %p294 = scmp.eq.s32.totalorder %s293, 0
  %p295 = pneg %p294
  %297 = shalt.err (%p295)
  %s298 = scalar_lea.sflag [#allocation3], 5
  %299 = vsyncmov %s298
  %s300 = vpop.sfrf %299
  %p301 = scmp.eq.s32.totalorder %s300, 0
  %p302 = pneg %p301
  %304 = shalt.err (%p302)
  %s305 = scalar_lea.sflag [#allocation3], 6
  %306 = vsyncmov %s305
  %s307 = vpop.sfrf %306
  %p308 = scmp.eq.s32.totalorder %s307, 0
  %p309 = pneg %p308
  %311 = shalt.err (%p309)
  %s312 = scalar_lea.sflag [#allocation3], 7
  %313 = vsyncmov %s312
  %s314 = vpop.sfrf %313
  %p315 = scmp.eq.s32.totalorder %s314, 0
  %p316 = pneg %p315
  %318 = shalt.err (%p316)

</llo_original>
